<compile_context>
chip_gen: v5e
topology: v5e:2x2
jax: 0.10.0
libtpu: 0.0.40
codegen_flags: <defaults>
</compile_context>

<pallas_src>
import functools

import jax
import jax.numpy as jnp
from jax import lax
from jax.experimental import pallas as pl
from jax.experimental.pallas import tpu as pltpu


# Soft per-input-tile VMEM budget (Pallas double-buffers it).  Conservative
# enough for v5e's 16 MiB scoped default and v7x's 64 MiB physical VMEM.
_IN_TILE_BYTES = 4 * 1024 * 1024


def _round_down_multiple(x, m):
    return max(m, (x // m) * m)


def _prod(xs):
    r = 1
    for v in xs:
        r *= int(v)
    return r


# ---------------------------------------------------------------------------
# Path A: 3D (pre, K, post) — reduce axis 1 (sublanes), kept `post` on lanes.
# ---------------------------------------------------------------------------
def _mean_sublane_kernel(x_ref, o_ref, acc_ref, *, inv_k, k_total, tk):
    k_idx = pl.program_id(2)

    @pl.when(k_idx == 0)
    def _init():
        acc_ref[...] = jnp.zeros_like(acc_ref)

    x = x_ref[...]
    if k_total % tk != 0:
        # Mask the K-edge block so padded (undefined) rows don't pollute the sum.
        kpos = k_idx * tk + lax.broadcasted_iota(jnp.int32, x.shape, 1)
        x = jnp.where(kpos < k_total, x, jnp.zeros_like(x))
    acc_ref[...] += jnp.sum(x, axis=1, dtype=jnp.float32)

    @pl.when(k_idx == pl.num_programs(2) - 1)
    def _fin():
        o_ref[...] = (acc_ref[...] * inv_k).astype(o_ref.dtype)


def _mean_axis1_3d(x3):
    pre, K, post = (int(s) for s in x3.shape)
    elem = x3.dtype.itemsize

    # Lane tile: kept `post` dim sits on lanes (lane-dense output).
    if post <= 128:
        tpost = post
    else:
        tpost = min(512, _round_down_multiple(post, 128))

    # Tile over `pre` (2nd-to-last dim of the output block: multiple of 8 or full).
    if pre <= 8:
        tpre = pre
    else:
        tpre = min(64, _round_down_multiple(pre, 8))

    # Reduction tile over K sized from the VMEM budget (multiple of 8 or full).
    tk_budget = max(1, _IN_TILE_BYTES // (tpre * tpost * elem))
    tk = K if K <= tk_budget else _round_down_multiple(tk_budget, 8)

    grid = (pl.cdiv(pre, tpre), pl.cdiv(post, tpost), pl.cdiv(K, tk))

    kernel = functools.partial(
        _mean_sublane_kernel, inv_k=1.0 / float(K), k_total=K, tk=tk)

    return pl.pallas_call(
        kernel,
        out_shape=jax.ShapeDtypeStruct((pre, post), x3.dtype),
        grid_spec=pltpu.PrefetchScalarGridSpec(
            num_scalar_prefetch=0,
            grid=grid,
            in_specs=[pl.BlockSpec((tpre, tk, tpost), lambda i, j, k: (i, k, j))],
            out_specs=pl.BlockSpec((tpre, tpost), lambda i, j, k: (i, j)),
            scratch_shapes=[pltpu.VMEM((tpre, tpost), jnp.float32)],
        ),
        compiler_params=pltpu.CompilerParams(
            dimension_semantics=("parallel", "parallel", "arbitrary"),
        ),
    )(x3)


# ---------------------------------------------------------------------------
# Path B: 2D (M, K) — reduce the lane axis (used when reduction is trailing).
# ---------------------------------------------------------------------------
def _mean_lane_kernel(x_ref, o_ref, acc_ref, *, inv_k, k_total, tk):
    k_idx = pl.program_id(1)

    @pl.when(k_idx == 0)
    def _init():
        acc_ref[...] = jnp.zeros_like(acc_ref)

    x = x_ref[...]
    if k_total % tk != 0:
        kpos = k_idx * tk + lax.broadcasted_iota(jnp.int32, x.shape, 1)
        x = jnp.where(kpos < k_total, x, jnp.zeros_like(x))
    acc_ref[...] += jnp.sum(x, axis=-1, keepdims=True, dtype=jnp.float32)

    @pl.when(k_idx == pl.num_programs(1) - 1)
    def _fin():
        o_ref[...] = (acc_ref[...] * inv_k).astype(o_ref.dtype)


def _mean_rows_2d(x2d):
    M, K = (int(s) for s in x2d.shape)
    elem = x2d.dtype.itemsize

    # Lane tile over the reduction axis (multiple of 128 or full).
    tk = K if K <= 128 else min(2048, _round_down_multiple(K, 128))

    # Row tile from the VMEM budget (multiple of 8 or full).
    tm_budget = max(8, _IN_TILE_BYTES // (tk * elem))
    tm = M if M <= 8 else _round_down_multiple(min(M, tm_budget, 1024), 8)

    grid = (pl.cdiv(M, tm), pl.cdiv(K, tk))

    kernel = functools.partial(
        _mean_lane_kernel, inv_k=1.0 / float(K), k_total=K, tk=tk)

    return pl.pallas_call(
        kernel,
        out_shape=jax.ShapeDtypeStruct((M, 1), x2d.dtype),
        grid_spec=pltpu.PrefetchScalarGridSpec(
            num_scalar_prefetch=0,
            grid=grid,
            in_specs=[pl.BlockSpec((tm, tk), lambda i, k: (i, k))],
            out_specs=pl.BlockSpec((tm, 1), lambda i, k: (i, 0)),
            scratch_shapes=[pltpu.VMEM((tm, 1), jnp.float32)],
        ),
        compiler_params=pltpu.CompilerParams(
            dimension_semantics=("parallel", "arbitrary"),
        ),
    )(x2d)


# ---------------------------------------------------------------------------
# torch.mean(input, dim, keepdim) equivalent.
# ---------------------------------------------------------------------------
@functools.partial(jax.jit, static_argnames=("dim", "keepdim"))
def mean_dim(x, dim, keepdim=False):
    ndim = x.ndim
    dims = (dim,) if isinstance(dim, int) else tuple(dim)
    dims = tuple(sorted(d % ndim for d in dims))

    # torch.mean requires a floating input; promote otherwise (output is f32).
    if not jnp.issubdtype(x.dtype, jnp.floating):
        x = x.astype(jnp.float32)

    keep_axes = tuple(a for a in range(ndim) if a not in dims)
    kept_shape = tuple(int(x.shape[a]) for a in keep_axes)
    K = _prod(x.shape[d] for d in dims)

    contiguous = dims == tuple(range(dims[0], dims[-1] + 1))
    if contiguous:
        pre = _prod(x.shape[a] for a in range(dims[0]))
        post = _prod(x.shape[a] for a in range(dims[-1] + 1, ndim))
    else:
        pre, post = _prod(kept_shape), 1

    if contiguous and post > 1:
        # Single-pass, transpose-free: (pre, K, post) view, lane-dense output.
        out = _mean_axis1_3d(x.reshape(pre, K, post)).reshape(kept_shape)
    else:
        if contiguous:
            x2d = x.reshape(pre, K)  # trailing-dim reduction: pure view
        else:
            # TODO(synk): non-contiguous reduced dims still need one XLA transpose.
            x2d = jnp.transpose(x, keep_axes + dims).reshape(_prod(kept_shape), K)
        out = _mean_rows_2d(x2d).reshape(kept_shape if kept_shape else ())

    if keepdim:
        out = out.reshape(
            tuple(1 if a in dims else int(x.shape[a]) for a in range(ndim)))
    return out


if __name__ == "__main__":
    key = jax.random.PRNGKey(0)
    x = jax.random.normal(key, (2, 4, 16, 16), dtype=jnp.float32)

    # torch.mean(input, dim=1, keepdim=False): middle-dim reduce (3D lane-dense path).
    out = mean_dim(x, dim=1, keepdim=False)
    jax.block_until_ready(out)
    ref = jnp.mean(x, axis=1)
    assert out.shape == ref.shape, (out.shape, ref.shape)
    assert out.dtype == ref.dtype, (out.dtype, ref.dtype)
    assert jnp.allclose(out, ref, atol=1e-5, rtol=1e-5)

    # dim=-1, keepdim=True: trailing-dim reduce (2D lane-reduce path).
    out_kd = mean_dim(x, dim=-1, keepdim=True)
    jax.block_until_ready(out_kd)
    ref_kd = jnp.mean(x, axis=-1, keepdims=True)
    assert out_kd.shape == ref_kd.shape
    assert jnp.allclose(out_kd, ref_kd, atol=1e-5, rtol=1e-5)

    # Tuple of (contiguous) dims.
    out_t = mean_dim(x, dim=(1, 2), keepdim=False)
    jax.block_until_ready(out_t)
    ref_t = jnp.mean(x, axis=(1, 2))
    assert out_t.shape == ref_t.shape
    assert jnp.allclose(out_t, ref_t, atol=1e-5, rtol=1e-5)

    print("KERNEL_OK")
</pallas_src>

<mosaic_0001>
module attributes {stable_mosaic.version = 11 : i64} {
  func.func @_mean_sublane_kernel(%arg0: i32, %arg1: i32, %arg2: i32, %arg3: memref<2x4x256xf32, #tpu.memory_space<vmem>>, %arg4: memref<2x256xf32, #tpu.memory_space<vmem>>, %arg5: memref<2x256xf32, #tpu.memory_space<vmem>>) attributes {dimension_semantics = [#tpu.dimension_semantics<parallel>, #tpu.dimension_semantics<parallel>, #tpu.dimension_semantics<arbitrary>], iteration_bounds = array<i64: 1, 1, 1>, scalar_prefetch = 0 : i64, scratch_operands = 1 : i64, tpu.core_type = #tpu.core_type<tc>, window_params = [{transform_indices = @transform_0, window_bounds = array<i64: 2, 4, 256>}, {transform_indices = @transform_1, window_bounds = array<i64: 2, 256>}]} {
    %c0_i32 = arith.constant 0 : i32
    %0 = arith.cmpi eq, %arg2, %c0_i32 : i32
    %1 = arith.extui %0 : i1 to i32
    %c0_i32_0 = arith.constant 0 : i32
    %2 = arith.cmpi ne, %1, %c0_i32_0 : i32
    scf.if %2 {
      %cst_9 = arith.constant 0.000000e+00 : f32
      %11 = vector.broadcast %cst_9 : f32 to vector<2x256xf32>
      %c0_10 = arith.constant 0 : index
      %c0_11 = arith.constant 0 : index
      %12 = vector.load %arg5[%c0_10, %c0_11] : memref<2x256xf32, #tpu.memory_space<vmem>>, vector<2x256xf32>
      tpu.vector_store %arg5[%c0_10, %c0_11], %11 {strides = array<i32>} : memref<2x256xf32, #tpu.memory_space<vmem>>, vector<2x256xf32>,
    } else {
    }
    %c0 = arith.constant 0 : index
    %c0_1 = arith.constant 0 : index
    %c0_2 = arith.constant 0 : index
    %3 = vector.load %arg3[%c0, %c0_1, %c0_2] : memref<2x4x256xf32, #tpu.memory_space<vmem>>, vector<2x4x256xf32>
    %c0_3 = arith.constant 0 : index
    %c0_4 = arith.constant 0 : index
    %4 = vector.load %arg5[%c0_3, %c0_4] : memref<2x256xf32, #tpu.memory_space<vmem>>, vector<2x256xf32>
    %cst = arith.constant dense<0.000000e+00> : vector<2x256xf32>
    %5 = vector.multi_reduction <add>, %3, %cst [1] : vector<2x4x256xf32> to vector<2x256xf32>
    %6 = arith.addf %4, %5 : vector<2x256xf32>
    %c0_5 = arith.constant 0 : index
    %c0_6 = arith.constant 0 : index
    %7 = vector.load %arg5[%c0_5, %c0_6] : memref<2x256xf32, #tpu.memory_space<vmem>>, vector<2x256xf32>
    tpu.vector_store %arg5[%c0_5, %c0_6], %6 {strides = array<i32>} : memref<2x256xf32, #tpu.memory_space<vmem>>, vector<2x256xf32>,
    %c0_i32_7 = arith.constant 0 : i32
    %8 = arith.cmpi eq, %arg2, %c0_i32_7 : i32
    %9 = arith.extui %8 : i1 to i32
    %c0_i32_8 = arith.constant 0 : i32
    %10 = arith.cmpi ne, %9, %c0_i32_8 : i32
    scf.if %10 {
      %c0_9 = arith.constant 0 : index
      %c0_10 = arith.constant 0 : index
      %11 = vector.load %arg5[%c0_9, %c0_10] : memref<2x256xf32, #tpu.memory_space<vmem>>, vector<2x256xf32>
      %cst_11 = arith.constant 2.500000e-01 : f32
      %12 = vector.broadcast %cst_11 : f32 to vector<2x256xf32>
      %13 = arith.mulf %11, %12 : vector<2x256xf32>
      %c0_12 = arith.constant 0 : index
      %c0_13 = arith.constant 0 : index
      %14 = vector.load %arg4[%c0_12, %c0_13] : memref<2x256xf32, #tpu.memory_space<vmem>>, vector<2x256xf32>
      tpu.vector_store %arg4[%c0_12, %c0_13], %13 {strides = array<i32>} : memref<2x256xf32, #tpu.memory_space<vmem>>, vector<2x256xf32>,
    } else {
    }
    return
  }
  func.func @transform_0(%arg0: i32, %arg1: i32, %arg2: i32) -> (i32, i32, i32) {
    %c0_i32 = arith.constant 0 : i32
    return %arg0, %arg2, %arg1 : i32, i32, i32
  }
  func.func @transform_1(%arg0: i32, %arg1: i32, %arg2: i32) -> (i32, i32) {
    %c0_i32 = arith.constant 0 : i32
    return %arg0, %arg1 : i32, i32
  }
}

</mosaic_0001>

<llo_original>
// kernel: mean_dim.1
$region0: #{mean_dim.1}
  #allocation0 [shape = 'u32[]', space=smem, size = 0x4, offset = 0x4, fixed_abs, tag = 'smem constant byte address 0x4 - core index']
  #allocation1 [shape = 'u32[72,128]{1,0:T(1,128)}', space=vmem, size = 0x9000, scoped, tag = 'internal scratch']
  #allocation2 [shape = 'f32[2,256]{1,0:T(2,128)}', space=vmem, size = 0x800, scoped, tag = 'scratch operand']
  %s0 = inlined_call_operand.vmem [shape: f32[2,4,256], index: 0, kind: input, shape index: {}]
  %s1 = inlined_call_operand.vmem [shape: f32[2,256], index: 1, kind: output, shape index: {}]
  %s2 = sld [smem:[#allocation0]]
  $region22: #{mean_dim.1} parent=0
    _
  %s4 = ssub.s32 1, %s2
  %s5 = scalar_select 0, %s4, %s2
  // Predicated region
  $region2: #{mean_dim.1} parent=0 // pred_check
    _
  $region3: #{mean_dim.1} parent=0 // pred_check_branch
    %7 = sbr.rel (0) target = $region5
  $region4: #{mean_dim.1} parent=0 // pred_region
    _
  $region5: #{mean_dim.1} parent=0 // pred_fallthru
    _
  %p8 = scmp.eq.s32.totalorder 0, 0
  // Predicated region
  $region6: #{mean_dim.1} parent=0 // pred_check
    %p9 = pneg %p8
  $region7: #{mean_dim.1} parent=0 // pred_check_branch
    %11 = sbr.rel (%p9) target = $region9
  $region8: #{mean_dim.1} parent=0 // pred_region
    %12 = vst [vmem:[#allocation2] sm:$0xf] 0.0
  $region9: #{mean_dim.1} parent=0 // pred_fallthru
    _
  %v13 = vld [vmem:[%s0] sm:$0xff]
  %v14 = vld [vmem:[%s0 + $0x8] sm:$0xff]
  %v15 = vld [vmem:[#allocation2] sm:$0xf]
  %18 = vst [vmem:[#allocation1] ss:$2 sm:$0xff] %v13
  %v19 = vld.sshfl [vmem:[#allocation1] sm:$0xff pattern:$0x75316420]
  %v20 = vld.sshfl [vmem:[#allocation1 + $0x8] sm:$0xff pattern:$0x75316420]
  %s21 = scalar_lea.vmem [#allocation1], 16
  %22 = vst [vmem:[%s21] ss:$2 sm:$0xff] %v14
  %v23 = vld.sshfl [vmem:[#allocation1 + $0x10] sm:$0xff pattern:$0x75316420]
  %v24 = vld.sshfl [vmem:[#allocation1 + $0x18] sm:$0xff pattern:$0x75316420]
  %vm29 = vcmask 1043456
  %v30 = vsel %vm29, %v19, 0.0
  %v31 = vrot.slane %v30, 4
  %v32 = vadd.f32 %v30, %v31
  %v33 = vrot.slane %v32, 2
  %v34 = vadd.f32 %v32, %v33
  %v35 = vrot.slane %v34, 1
  %v36 = vadd.f32 %v34, %v35
  %v37 = vsel %vm29, %v20, 0.0
  %v38 = vrot.slane %v37, 4
  %v39 = vadd.f32 %v37, %v38
  %v40 = vrot.slane %v39, 2
  %v41 = vadd.f32 %v39, %v40
  %v42 = vrot.slane %v41, 1
  %v43 = vadd.f32 %v41, %v42
  %v44 = vsel %vm29, %v23, 0.0
  %v45 = vrot.slane %v44, 4
  %v46 = vadd.f32 %v44, %v45
  %v47 = vrot.slane %v46, 2
  %v48 = vadd.f32 %v46, %v47
  %v49 = vrot.slane %v48, 1
  %v50 = vadd.f32 %v48, %v49
  %v51 = vsel %vm29, %v24, 0.0
  %v52 = vrot.slane %v51, 4
  %v53 = vadd.f32 %v51, %v52
  %v54 = vrot.slane %v53, 2
  %v55 = vadd.f32 %v53, %v54
  %v56 = vrot.slane %v55, 1
  %v57 = vadd.f32 %v55, %v56
  %v62 = vrot.slane %v43, 6
  %v63 = vrot.slane %v57, 6
  %vm64 = vcmask 1041408
  %v65 = vsel %vm64, %v36, %v62
  %v66 = vsel %vm64, %v50, %v63
  %vm67 = vcmask 1044484
  %v68 = vsel %vm67, %v65, %v65
  %vm69 = vcmask 1046534
  %v70 = vsel %vm69, %v65, %v68
  %v71 = vrot.slane %v66, 7
  %vm72 = vcmask 1041409
  %v73 = vsel %vm72, %v71, %v70
  %vm74 = vcmask 1043459
  %v75 = vsel %vm74, %v71, %v73
  %vm76 = vcmask 1045509
  %v77 = vsel %vm76, %v71, %v75
  %vm78 = vcmask 1047559
  %v79 = vsel %vm78, %v71, %v77
  %v81 = vadd.f32 %v15, %v79
  %82 = vst [vmem:[#allocation2] sm:$0xf] %v81
  // Predicated region
  $region10: #{mean_dim.1} parent=0 // pred_check
    %p83 = pneg %p8
  $region11: #{mean_dim.1} parent=0 // pred_check_branch
    %85 = sbr.rel (%p83) target = $region13
  $region12: #{mean_dim.1} parent=0 // pred_region
    %v86 = vld [vmem:[#allocation2] sm:$0xf]
    %v87 = vmul.f32 %v86, 0.25
    %88 = vst [vmem:[%s1] sm:$0xf] %v87
  $region13: #{mean_dim.1} parent=0 // pred_fallthru
    _
  // Predicated region
  $region14: #{mean_dim.1} parent=0 // pred_check
    _
  $region15: #{mean_dim.1} parent=0 // pred_check_branch
    %90 = sbr.rel (0) target = $region17
  $region16: #{mean_dim.1} parent=0 // pred_region
    _
  $region17: #{mean_dim.1} parent=0 // pred_fallthru
    _
  // Predicated region
  $region18: #{mean_dim.1} parent=0 // pred_check
    _
  $region19: #{mean_dim.1} parent=0 // pred_check_branch
    %92 = sbr.rel (0) target = $region21
  $region20: #{mean_dim.1} parent=0 // pred_region
    _
  $region21: #{mean_dim.1} parent=0 // pred_fallthru
    _

</llo_original>
